<compile_context>
chip_gen: v6e
topology: v6e:2x2x1
jax: 0.10.0
libtpu: 0.0.40
codegen_flags: <defaults>
</compile_context>

<pallas_src>
import jax
import jax.numpy as jnp
from jax.experimental import pallas as pl
from jax.experimental.pallas import tpu as pltpu

HIDDEN = 16                  # fc1 / fc2 width, fixed by the module definition
DEFAULT_TILE_ITEMS = 65536   # batch items per grid step (4096 packed rows at P=16)


def _ddpg_actor_kernel(x_ref, w1_ref, b1_ref, w2_ref, b2_ref, w3_ref, b3_ref,
                       g_ref, o_ref):
    # x: (rows, P*S) -- P batch items packed along the 128-lane axis.
    x = x_ref[...].astype(jnp.float32)

    # fc1 + relu: block-diagonal weights keep each item's features in its own
    # lane group -> (rows, P*H)
    h = jnp.dot(x, w1_ref[...], preferred_element_type=jnp.float32) + b1_ref[...]
    h = jnp.maximum(h, 0.0)

    # fc2 + relu: (rows, P*H)
    h = jnp.dot(h, w2_ref[...], preferred_element_type=jnp.float32) + b2_ref[...]
    h = jnp.maximum(h, 0.0)

    # fc3: (rows, P*A)
    logits = jnp.dot(h, w3_ref[...], preferred_element_type=jnp.float32) + b3_ref[...]

    # Softmax over each item's A lanes.  Softmax is shift invariant, so
    # subtracting the per-row max is exact while guaranteeing exp() <= 1; the
    # clamp only guards full underflow for pathological cross-item spreads.
    m = jnp.max(logits, axis=1, keepdims=True)
    e = jnp.exp(jnp.maximum(logits - m, -80.0))
    # Per-item sums broadcast back to the item's lanes via a tiny block-diagonal
    # ones matmul (MXU has huge slack); exact divide per the review.
    denom = jnp.dot(e, g_ref[...], preferred_element_type=jnp.float32)
    o_ref[...] = (e / denom).astype(o_ref.dtype)


def ddpg_actor_disc(state, params, *, tile_items=DEFAULT_TILE_ITEMS):
    """state: (B, state_dim) row-major.  Returns (B, action_dim) softmax probs."""
    w1, b1, w2, b2, w3, b3 = params      # torch layout: (out, in) weights, (out,) biases
    B, S = state.shape
    H = w1.shape[0]
    A = w3.shape[0]

    # Pack P batch items per row so the minor (lane) dim is ~128 wide.  The
    # packed views of the HBM input/output are contiguous reshapes -> free.
    P = max(1, 128 // S)
    B_pad = P * pl.cdiv(B, P)
    x = state if B_pad == B else jnp.pad(state, ((0, B_pad - B), (0, 0)))
    rows = B_pad // P
    x_p = x.reshape(rows, P * S)

    f32 = jnp.float32
    eye = jnp.eye(P, dtype=f32)
    w1b = jnp.kron(eye, w1.T.astype(f32))                    # (P*S, P*H)
    w2b = jnp.kron(eye, w2.T.astype(f32))                    # (P*H, P*H)
    w3b = jnp.kron(eye, w3.T.astype(f32))                    # (P*H, P*A)
    b1p = jnp.tile(b1.astype(f32).reshape(1, H), (1, P))     # (1, P*H)
    b2p = jnp.tile(b2.astype(f32).reshape(1, H), (1, P))     # (1, P*H)
    b3p = jnp.tile(b3.astype(f32).reshape(1, A), (1, P))     # (1, P*A)
    g = jnp.kron(eye, jnp.ones((A, A), f32))                 # (P*A, P*A) per-item sum bcast

    # Tile the packed-row axis.  Large tiles amortize the ~0.35us per-step
    # overhead; keep >= 2 grid steps when possible so the BlockSpec pipeline
    # overlaps DMA with compute (and both v7x TensorCores get work).
    tile_rows = max(1, tile_items // P)
    if tile_rows >= rows:
        tile_rows = ((rows + 1) // 2 + 7) // 8 * 8 if rows >= 16 else rows
    else:
        tile_rows = max(8, (tile_rows // 8) * 8)
    grid_r = pl.cdiv(rows, tile_rows)

    win, wh, wout = P * S, P * H, P * A
    resident = lambda shape: pl.BlockSpec(shape, lambda i: (0, 0))

    flops = 2 * rows * (win * wh + wh * wh + wh * wout + wout * wout)
    bytes_accessed = (int(x_p.size) * x_p.dtype.itemsize
                      + 4 * int(w1b.size + w2b.size + w3b.size + g.size
                                + b1p.size + b2p.size + b3p.size)
                      + rows * wout * 4)

    out_p = pl.pallas_call(
        _ddpg_actor_kernel,
        out_shape=jax.ShapeDtypeStruct((rows, wout), jnp.float32),
        grid=(grid_r,),
        in_specs=[
            pl.BlockSpec((tile_rows, win), lambda i: (i, 0)),   # packed state
            resident((win, wh)), resident((1, wh)),             # fc1
            resident((wh, wh)), resident((1, wh)),              # fc2
            resident((wh, wout)), resident((1, wout)),          # fc3
            resident((wout, wout)),                              # softmax sum bcast
        ],
        out_specs=pl.BlockSpec((tile_rows, wout), lambda i: (i, 0)),
        compiler_params=pltpu.CompilerParams(
            dimension_semantics=("parallel",),        # megacore sharding on v7x
            vmem_limit_bytes=40 * 1024 * 1024),
        cost_estimate=pl.CostEstimate(
            flops=int(flops),
            transcendentals=int(rows * wout),
            bytes_accessed=int(bytes_accessed)),
    )(x_p, w1b, b1p, w2b, b2p, w3b, b3p, g)

    out = out_p.reshape(B_pad, A)        # free contiguous reshape back to row-major
    return out if B_pad == B else out[:B]


def init_params(key, state_dim, action_dim):
    """nn.Linear-style init: U(-1/sqrt(fan_in), 1/sqrt(fan_in)); torch layout."""
    ks = jax.random.split(key, 6)

    def linear(kw, kb, fan_in, fan_out):
        bound = 1.0 / jnp.sqrt(fan_in)
        w = jax.random.uniform(kw, (fan_out, fan_in), jnp.float32, -bound, bound)
        b = jax.random.uniform(kb, (fan_out,), jnp.float32, -bound, bound)
        return w, b

    w1, b1 = linear(ks[0], ks[1], state_dim, HIDDEN)
    w2, b2 = linear(ks[2], ks[3], HIDDEN, HIDDEN)
    w3, b3 = linear(ks[4], ks[5], HIDDEN, action_dim)
    return (w1, b1, w2, b2, w3, b3)


def reference(state, params):
    w1, b1, w2, b2, w3, b3 = params
    hp = jax.lax.Precision.HIGHEST
    h = jnp.maximum(jnp.dot(state, w1.T, precision=hp) + b1, 0.0)
    h = jnp.maximum(jnp.dot(h, w2.T, precision=hp) + b2, 0.0)
    logits = jnp.dot(h, w3.T, precision=hp) + b3
    return jax.nn.softmax(logits, axis=1)


if __name__ == "__main__":
    key = jax.random.PRNGKey(0)
    k_state, k_params, k_big = jax.random.split(key, 3)

    batch, state_dim, action_dim = 2, 8, 4
    state = jax.random.normal(k_state, (batch, state_dim), jnp.float32)
    params = init_params(k_params, state_dim, action_dim)

    out = jax.block_until_ready(ddpg_actor_disc(state, params))
    ref = reference(state, params)
    assert out.shape == (batch, action_dim)
    assert jnp.allclose(out, ref, atol=2e-3, rtol=2e-3)
    assert jnp.allclose(jnp.sum(out, axis=1), jnp.ones((batch,)), atol=1e-3)

    # Also exercise the multi-step / ragged-tile path (B not a multiple of 16).
    big_b = 1000
    big_state = jax.random.normal(k_big, (big_b, state_dim), jnp.float32)
    big_out = jax.block_until_ready(ddpg_actor_disc(big_state, params))
    big_ref = reference(big_state, params)
    assert big_out.shape == (big_b, action_dim)
    assert jnp.allclose(big_out, big_ref, atol=2e-3, rtol=2e-3)

    print("KERNEL_OK")
</pallas_src>

<mosaic_0001>
module attributes {stable_mosaic.version = 11 : i64} {
  func.func @_ddpg_actor_kernel(%arg0: i32, %arg1: memref<1x128xf32, #tpu.memory_space<vmem>>, %arg2: memref<128x256xf32, #tpu.memory_space<vmem>>, %arg3: memref<1x256xf32, #tpu.memory_space<vmem>>, %arg4: memref<256x256xf32, #tpu.memory_space<vmem>>, %arg5: memref<1x256xf32, #tpu.memory_space<vmem>>, %arg6: memref<256x64xf32, #tpu.memory_space<vmem>>, %arg7: memref<1x64xf32, #tpu.memory_space<vmem>>, %arg8: memref<64x64xf32, #tpu.memory_space<vmem>>, %arg9: memref<1x64xf32, #tpu.memory_space<vmem>>) attributes {dimension_semantics = [#tpu.dimension_semantics<parallel>], iteration_bounds = array<i64: 1>, scalar_prefetch = 0 : i64, scratch_operands = 0 : i64, tpu.core_type = #tpu.core_type<tc>, window_params = [{transform_indices = @transform_0, window_bounds = array<i64: 1, 128>}, {pipeline_mode = #tpu.pipeline_mode<synchronous>, transform_indices = @transform_1, window_bounds = array<i64: 128, 256>}, {pipeline_mode = #tpu.pipeline_mode<synchronous>, transform_indices = @transform_2, window_bounds = array<i64: 1, 256>}, {pipeline_mode = #tpu.pipeline_mode<synchronous>, transform_indices = @transform_3, window_bounds = array<i64: 256, 256>}, {pipeline_mode = #tpu.pipeline_mode<synchronous>, transform_indices = @transform_4, window_bounds = array<i64: 1, 256>}, {pipeline_mode = #tpu.pipeline_mode<synchronous>, transform_indices = @transform_5, window_bounds = array<i64: 256, 64>}, {pipeline_mode = #tpu.pipeline_mode<synchronous>, transform_indices = @transform_6, window_bounds = array<i64: 1, 64>}, {pipeline_mode = #tpu.pipeline_mode<synchronous>, transform_indices = @transform_7, window_bounds = array<i64: 64, 64>}, {transform_indices = @transform_8, window_bounds = array<i64: 1, 64>}]} {
    %c0 = arith.constant 0 : index
    %c0_0 = arith.constant 0 : index
    %0 = vector.load %arg1[%c0, %c0_0] : memref<1x128xf32, #tpu.memory_space<vmem>>, vector<1x128xf32>
    %c0_1 = arith.constant 0 : index
    %c0_2 = arith.constant 0 : index
    %1 = vector.load %arg2[%c0_1, %c0_2] : memref<128x256xf32, #tpu.memory_space<vmem>>, vector<128x256xf32>
    %cst = arith.constant dense<0.000000e+00> : vector<1x256xf32>
    %2 = tpu.matmul %0, %1, %cst {dimension_numbers = #tpu.dot_dimension_numbers<[1], [0], [0], [1], [0, 0, 1, 1], [], []>} : vector<1x128xf32>, vector<128x256xf32>, vector<1x256xf32> -> vector<1x256xf32>
    %c0_3 = arith.constant 0 : index
    %c0_4 = arith.constant 0 : index
    %3 = vector.load %arg3[%c0_3, %c0_4] : memref<1x256xf32, #tpu.memory_space<vmem>>, vector<1x256xf32>
    %4 = arith.addf %2, %3 : vector<1x256xf32>
    %cst_5 = arith.constant 0.000000e+00 : f32
    %5 = vector.broadcast %cst_5 : f32 to vector<1x256xf32>
    %6 = arith.maximumf %4, %5 : vector<1x256xf32>
    %c0_6 = arith.constant 0 : index
    %c0_7 = arith.constant 0 : index
    %7 = vector.load %arg4[%c0_6, %c0_7] : memref<256x256xf32, #tpu.memory_space<vmem>>, vector<256x256xf32>
    %cst_8 = arith.constant dense<0.000000e+00> : vector<1x256xf32>
    %8 = tpu.matmul %6, %7, %cst_8 {dimension_numbers = #tpu.dot_dimension_numbers<[1], [0], [0], [1], [0, 0, 1, 1], [], []>} : vector<1x256xf32>, vector<256x256xf32>, vector<1x256xf32> -> vector<1x256xf32>
    %c0_9 = arith.constant 0 : index
    %c0_10 = arith.constant 0 : index
    %9 = vector.load %arg5[%c0_9, %c0_10] : memref<1x256xf32, #tpu.memory_space<vmem>>, vector<1x256xf32>
    %10 = arith.addf %8, %9 : vector<1x256xf32>
    %cst_11 = arith.constant 0.000000e+00 : f32
    %11 = vector.broadcast %cst_11 : f32 to vector<1x256xf32>
    %12 = arith.maximumf %10, %11 : vector<1x256xf32>
    %c0_12 = arith.constant 0 : index
    %c0_13 = arith.constant 0 : index
    %13 = vector.load %arg6[%c0_12, %c0_13] : memref<256x64xf32, #tpu.memory_space<vmem>>, vector<256x64xf32>
    %cst_14 = arith.constant dense<0.000000e+00> : vector<1x64xf32>
    %14 = tpu.matmul %12, %13, %cst_14 {dimension_numbers = #tpu.dot_dimension_numbers<[1], [0], [0], [1], [0, 0, 1, 1], [], []>} : vector<1x256xf32>, vector<256x64xf32>, vector<1x64xf32> -> vector<1x64xf32>
    %c0_15 = arith.constant 0 : index
    %c0_16 = arith.constant 0 : index
    %15 = vector.load %arg7[%c0_15, %c0_16] : memref<1x64xf32, #tpu.memory_space<vmem>>, vector<1x64xf32>
    %16 = arith.addf %14, %15 : vector<1x64xf32>
    %cst_17 = arith.constant dense<0xFF800000> : vector<1xf32>
    %17 = vector.multi_reduction <maximumf>, %16, %cst_17 [1] : vector<1x64xf32> to vector<1xf32>
    %18 = vector.shape_cast %17 : vector<1xf32> to vector<1x1xf32>
    %19 = vector.broadcast %18 : vector<1x1xf32> to vector<1x64xf32>
    %20 = arith.subf %16, %19 : vector<1x64xf32>
    %cst_18 = arith.constant -8.000000e+01 : f32
    %21 = vector.broadcast %cst_18 : f32 to vector<1x64xf32>
    %22 = arith.maximumf %20, %21 : vector<1x64xf32>
    %23 = math.exp %22 : vector<1x64xf32>
    %c0_19 = arith.constant 0 : index
    %c0_20 = arith.constant 0 : index
    %24 = vector.load %arg8[%c0_19, %c0_20] : memref<64x64xf32, #tpu.memory_space<vmem>>, vector<64x64xf32>
    %cst_21 = arith.constant dense<0.000000e+00> : vector<1x64xf32>
    %25 = tpu.matmul %23, %24, %cst_21 {dimension_numbers = #tpu.dot_dimension_numbers<[1], [0], [0], [1], [0, 0, 1, 1], [], []>} : vector<1x64xf32>, vector<64x64xf32>, vector<1x64xf32> -> vector<1x64xf32>
    %26 = arith.divf %23, %25 : vector<1x64xf32>
    %c0_22 = arith.constant 0 : index
    %c0_23 = arith.constant 0 : index
    %27 = vector.load %arg9[%c0_22, %c0_23] : memref<1x64xf32, #tpu.memory_space<vmem>>, vector<1x64xf32>
    tpu.vector_store %arg9[%c0_22, %c0_23], %26 {strides = array<i32>} : memref<1x64xf32, #tpu.memory_space<vmem>>, vector<1x64xf32>,
    return
  }
  func.func @transform_0(%arg0: i32) -> (i32, i32) {
    %c0_i32 = arith.constant 0 : i32
    %c0_i32_0 = arith.constant 0 : i32
    return %arg0, %c0_i32 : i32, i32
  }
  func.func @transform_1(%arg0: i32) -> (i32, i32) {
    %c0_i32 = arith.constant 0 : i32
    %c0_i32_0 = arith.constant 0 : i32
    %c0_i32_1 = arith.constant 0 : i32
    return %c0_i32, %c0_i32_0 : i32, i32
  }
  func.func @transform_2(%arg0: i32) -> (i32, i32) {
    %c0_i32 = arith.constant 0 : i32
    %c0_i32_0 = arith.constant 0 : i32
    %c0_i32_1 = arith.constant 0 : i32
    return %c0_i32, %c0_i32_0 : i32, i32
  }
  func.func @transform_3(%arg0: i32) -> (i32, i32) {
    %c0_i32 = arith.constant 0 : i32
    %c0_i32_0 = arith.constant 0 : i32
    %c0_i32_1 = arith.constant 0 : i32
    return %c0_i32, %c0_i32_0 : i32, i32
  }
  func.func @transform_4(%arg0: i32) -> (i32, i32) {
    %c0_i32 = arith.constant 0 : i32
    %c0_i32_0 = arith.constant 0 : i32
    %c0_i32_1 = arith.constant 0 : i32
    return %c0_i32, %c0_i32_0 : i32, i32
  }
  func.func @transform_5(%arg0: i32) -> (i32, i32) {
    %c0_i32 = arith.constant 0 : i32
    %c0_i32_0 = arith.constant 0 : i32
    %c0_i32_1 = arith.constant 0 : i32
    return %c0_i32, %c0_i32_0 : i32, i32
  }
  func.func @transform_6(%arg0: i32) -> (i32, i32) {
    %c0_i32 = arith.constant 0 : i32
    %c0_i32_0 = arith.constant 0 : i32
    %c0_i32_1 = arith.constant 0 : i32
    return %c0_i32, %c0_i32_0 : i32, i32
  }
  func.func @transform_7(%arg0: i32) -> (i32, i32) {
    %c0_i32 = arith.constant 0 : i32
    %c0_i32_0 = arith.constant 0 : i32
    %c0_i32_1 = arith.constant 0 : i32
    return %c0_i32, %c0_i32_0 : i32, i32
  }
  func.func @transform_8(%arg0: i32) -> (i32, i32) {
    %c0_i32 = arith.constant 0 : i32
    %c0_i32_0 = arith.constant 0 : i32
    return %arg0, %c0_i32 : i32, i32
  }
}

</mosaic_0001>

<llo_original>
// kernel: tpu_custom_call.1
$region0: #{tpu_custom_call.1}
  #allocation0 [shape = 'u32[]', space=smem, size = 0x4, offset = 0x4, fixed_abs, tag = 'smem constant byte address 0x4 - core index']
  #allocation1 [shape = 'u32[144,128]{1,0:T(1,128)}', space=vmem, size = 0x12000, scoped, tag = 'internal scratch']
  %s0 = inlined_call_operand.vmem [shape: f32[1,128], index: 0, kind: input, shape index: {}]
  %s1 = inlined_call_operand.vmem [shape: f32[128,256], index: 1, kind: input, shape index: {}]
  %s2 = inlined_call_operand.vmem [shape: f32[1,256], index: 2, kind: input, shape index: {}]
  %s3 = inlined_call_operand.hbm [shape: f32[256,256], index: 3, kind: input, shape index: {}]
  %s4 = inlined_call_operand.vmem [shape: f32[1,256], index: 4, kind: input, shape index: {}]
  %s5 = inlined_call_operand.vmem [shape: f32[256,64], index: 5, kind: input, shape index: {}]
  %s6 = inlined_call_operand.vmem [shape: f32[1,64], index: 6, kind: input, shape index: {}]
  %s7 = inlined_call_operand.vmem [shape: f32[64,64], index: 7, kind: input, shape index: {}]
  %s8 = inlined_call_operand.hbm [shape: f32[1,64], index: 8, kind: output, shape index: {}]
  %s9 = sld [smem:[#allocation0]]
  $region46: #{tpu_custom_call.1} parent=0
    _
  %s11 = ssub.s32 1, %s9
  %s12 = scalar_select 0, %s11, %s9
  $region1: #{tpu_custom_call.1} parent=0
    #allocation2 [shape = 'u8[262144]{0}', space=vmem, size = 0x40000, scoped, tag = 'input window, operand 3, single buffered']
    #allocation3 [shape = 's32[1]{0}', space=sflag, size = 0x4, scoped, tag = 'scoped memory for tpu_custom_call.1']
    #allocation4 [shape = 's32[1]{0}', space=sflag, size = 0x4, scoped, tag = 'scoped memory for tpu_custom_call.1']
    #allocation5 [shape = 'u8[512]{0}', space=vmem, size = 0x400, scoped, tag = 'output window, operand 0, single buffered']
    %13 = vsyncpa [#allocation3], 0
    %14 = vsyncpa [#allocation4], 0
    // Predicated region
    $region2: #{tpu_custom_call.1} parent=1 // pred_check
      _
    $region3: #{tpu_custom_call.1} parent=1 // pred_check_branch
      %16 = sbr.rel (0) target = $region5
    $region4: #{tpu_custom_call.1} parent=1 // pred_region
      _
    $region5: #{tpu_custom_call.1} parent=1 // pred_fallthru
      _
    // Predicated region
    $region6: #{tpu_custom_call.1} parent=1 // pred_check
      _
    $region7: #{tpu_custom_call.1} parent=1 // pred_check_branch
      %18 = sbr.rel (0) target = $region9
    $region8: #{tpu_custom_call.1} parent=1 // pred_region
      _
    $region9: #{tpu_custom_call.1} parent=1 // pred_fallthru
      _
    // Predicated region
    $region10: #{tpu_custom_call.1} parent=1 // pred_check
      _
    $region11: #{tpu_custom_call.1} parent=1 // pred_check_branch
      %20 = sbr.rel (0) target = $region13
    $region12: #{tpu_custom_call.1} parent=1 // pred_region
      _
    $region13: #{tpu_custom_call.1} parent=1 // pred_fallthru
      _
    // Predicated region
    $region14: #{tpu_custom_call.1} parent=1 // pred_check
      _
    $region15: #{tpu_custom_call.1} parent=1 // pred_check_branch
      %22 = sbr.rel (0) target = $region17
    $region16: #{tpu_custom_call.1} parent=1 // pred_region
      %s24 = ssub.s32 8192, 8192
      %25 = vsyncadd [#allocation3], %s24
      %s26 = sshll.u32 [#allocation2], 4
      %s27 = int_to_ptr.vmem [resolvable:$true] %s26
      %32 = dma.hbm_to_vmem [thread:$0]  %s3, 8192, %s27, [#allocation3], 256, 256, 16
    $region17: #{tpu_custom_call.1} parent=1 // pred_fallthru
      _
    // Predicated region
    $region18: #{tpu_custom_call.1} parent=1 // pred_check
      _
    $region19: #{tpu_custom_call.1} parent=1 // pred_check_branch
      %34 = sbr.rel (0) target = $region21
    $region20: #{tpu_custom_call.1} parent=1 // pred_region
      _
    $region21: #{tpu_custom_call.1} parent=1 // pred_fallthru
      _
    // Predicated region
    $region22: #{tpu_custom_call.1} parent=1 // pred_check
      _
    $region23: #{tpu_custom_call.1} parent=1 // pred_check_branch
      %36 = sbr.rel (0) target = $region25
    $region24: #{tpu_custom_call.1} parent=1 // pred_region
      _
    $region25: #{tpu_custom_call.1} parent=1 // pred_fallthru
      _
    // Predicated region
    $region26: #{tpu_custom_call.1} parent=1 // pred_check
      _
    $region27: #{tpu_custom_call.1} parent=1 // pred_check_branch
      %38 = sbr.rel (0) target = $region29
    $region28: #{tpu_custom_call.1} parent=1 // pred_region
      _
    $region29: #{tpu_custom_call.1} parent=1 // pred_fallthru
      _
    // Predicated region
    $region30: #{tpu_custom_call.1} parent=1 // pred_check
      _
    $region31: #{tpu_custom_call.1} parent=1 // pred_check_branch
      %40 = sbr.rel (0) target = $region33
    $region32: #{tpu_custom_call.1} parent=1 // pred_region
      _
    $region33: #{tpu_custom_call.1} parent=1 // pred_fallthru
      _
    // Predicated region
    $region34: #{tpu_custom_call.1} parent=1 // pred_check
      _
    $region35: #{tpu_custom_call.1} parent=1 // pred_check_branch
      %42 = sbr.rel (0) target = $region37
    $region36: #{tpu_custom_call.1} parent=1 // pred_region
      %43 = dma.done [#allocation3], 8192
    $region37: #{tpu_custom_call.1} parent=1 // pred_fallthru
      _
    %v44 = vld [vmem:[%s0] sm:$0x1]
    %v45 = vld [vmem:[%s1] sm:$0xff]
    %v46 = vld [vmem:[%s1 + $0x8] sm:$0xff]
    %v47 = vld [vmem:[%s1 + $0x10] sm:$0xff]
    %v48 = vld [vmem:[%s1 + $0x18] sm:$0xff]
    %v49 = vld [vmem:[%s1 + $0x20] sm:$0xff]
    %v50 = vld [vmem:[%s1 + $0x28] sm:$0xff]
    %v51 = vld [vmem:[%s1 + $0x30] sm:$0xff]
    %v52 = vld [vmem:[%s1 + $0x38] sm:$0xff]
    %v53 = vld [vmem:[%s1 + $0x40] sm:$0xff]
    %v54 = vld [vmem:[%s1 + $0x48] sm:$0xff]
    %v55 = vld [vmem:[%s1 + $0x50] sm:$0xff]
    %v56 = vld [vmem:[%s1 + $0x58] sm:$0xff]
    %v57 = vld [vmem:[%s1 + $0x60] sm:$0xff]
    %v58 = vld [vmem:[%s1 + $0x68] sm:$0xff]
    %v59 = vld [vmem:[%s1 + $0x70] sm:$0xff]
    %v60 = vld [vmem:[%s1 + $0x78] sm:$0xff]
    %v61 = vld [vmem:[%s1 + $0x80] sm:$0xff]
    %v62 = vld [vmem:[%s1 + $0x88] sm:$0xff]
    %v63 = vld [vmem:[%s1 + $0x90] sm:$0xff]
    %v64 = vld [vmem:[%s1 + $0x98] sm:$0xff]
    %v65 = vld [vmem:[%s1 + $0xa0] sm:$0xff]
    %v66 = vld [vmem:[%s1 + $0xa8] sm:$0xff]
    %v67 = vld [vmem:[%s1 + $0xb0] sm:$0xff]
    %v68 = vld [vmem:[%s1 + $0xb8] sm:$0xff]
    %v69 = vld [vmem:[%s1 + $0xc0] sm:$0xff]
    %v70 = vld [vmem:[%s1 + $0xc8] sm:$0xff]
    %v71 = vld [vmem:[%s1 + $0xd0] sm:$0xff]
    %v72 = vld [vmem:[%s1 + $0xd8] sm:$0xff]
    %v73 = vld [vmem:[%s1 + $0xe0] sm:$0xff]
    %v74 = vld [vmem:[%s1 + $0xe8] sm:$0xff]
    %v75 = vld [vmem:[%s1 + $0xf0] sm:$0xff]
    %v76 = vld [vmem:[%s1 + $0xf8] sm:$0xff]
    %v77 = vld [vmem:[%s2] sm:$0x3]
    %v79 = vlaneseq
    %v80 = vshrl.u32 %v79, 7
    %v81 = vsub.s32 0, %v80
    %v82 = vrot.slane %v77, %v81
    %v83 = vlaneseq
    %v84 = vshrl.u32 %v83, 7
    %v85 = vsub.s32 1, %v84
    %v86 = vrot.slane %v77, %v85
    %89 = vmatprep.subr.mxu0 %v76
    %90 = vmatpush1.msra.mxu0 %v75
    %91 = vmatprep.subr.mxu0 %v74
    %92 = vmatpush1.msra.mxu0 %v73
    %93 = vmatprep.subr.mxu0 %v72
    %94 = vmatpush1.msra.mxu0 %v71
    %95 = vmatprep.subr.mxu0 %v70
    %96 = vmatpush1.msra.mxu0 %v69
    %97 = vmatprep.subr.mxu0 %v68
    %98 = vmatpush1.msra.mxu0 %v67
    %99 = vmatprep.subr.mxu0 %v66
    %100 = vmatpush1.msra.mxu0 %v65
    %101 = vmatprep.subr.mxu0 %v64
    %102 = vmatpush1.msra.mxu0 %v63
    %103 = vmatprep.subr.mxu0 %v62
    %104 = vmatpush1.msra.mxu0 %v61
    %105 = vmatprep.subr.mxu0 %v60
    %106 = vmatpush1.msra.mxu0 %v59
    %107 = vmatprep.subr.mxu0 %v58
    %108 = vmatpush1.msra.mxu0 %v57
    %109 = vmatprep.subr.mxu0 %v56
    %110 = vmatpush1.msra.mxu0 %v55
    %111 = vmatprep.subr.mxu0 %v54
    %112 = vmatpush1.msra.mxu0 %v53
    %113 = vmatprep.subr.mxu0 %v52
    %114 = vmatpush1.msra.mxu0 %v51
    %115 = vmatprep.subr.mxu0 %v50
    %116 = vmatpush1.msra.mxu0 %v49
    %117 = vmatprep.subr.mxu0 %v48
    %118 = vmatpush1.msra.mxu0 %v47
    %119 = vmatprep.subr.mxu0 %v46
    %120 = vmatpush1.msra.mxu0 %v45
    %121 = vmatprep.subr.mxu0 0.0
    %122 = vmatpush2.msra.mxu0 0.0
    %123 = vmatprep.subr.mxu0 0.0
    %124 = vmatpush2.msra.mxu0 0.0
    %125 = vmatprep.subr.mxu0 0.0
    %126 = vmatpush2.msra.mxu0 0.0
    %127 = vmatprep.subr.mxu0 0.0
    %128 = vmatpush2.msra.mxu0 0.0
    %129 = vmatprep.subr.mxu0 0.0
    %130 = vmatpush2.msra.mxu0 0.0
    %131 = vmatprep.subr.mxu0 0.0
    %132 = vmatpush2.msra.mxu0 0.0
    %133 = vmatprep.subr.mxu0 0.0
    %134 = vmatpush2.msra.mxu0 0.0
    %135 = vmatprep.subr.mxu0 0.0
    %136 = vmatpush2.msra.mxu0 0.0
    %137 = vmatprep.subr.mxu0 0.0
    %138 = vmatpush2.msra.mxu0 0.0
    %139 = vmatprep.subr.mxu0 0.0
    %140 = vmatpush2.msra.mxu0 0.0
    %141 = vmatprep.subr.mxu0 0.0
    %142 = vmatpush2.msra.mxu0 0.0
    %143 = vmatprep.subr.mxu0 0.0
    %144 = vmatpush2.msra.mxu0 0.0
    %145 = vmatprep.subr.mxu0 0.0
    %146 = vmatpush2.msra.mxu0 0.0
    %147 = vmatprep.subr.mxu0 0.0
    %148 = vmatpush2.msra.mxu0 0.0
    %149 = vmatprep.subr.mxu0 0.0
    %150 = vmatpush2.msra.mxu0 0.0
    %151 = vmatprep.subr.mxu0 0.0
    %152 = vmatpush2.msra.mxu0 0.0
    %153 = vmatprep.mubr.f32.mxu0 0.0
    %154 = vmatmul.mubr.f32.gmra.mxu0 %v44
    %v155 = vpop.f32.mrf.mxu0
    %v156 = vadd.f32 %v82, %v155
    %v157 = vpop.f32.mrf.mxu0
    %v158 = vadd.f32 %v86, %v157
    %159 = vdwg.mxu0
    %v160 = vmax.f32 %v156, 0.0
    %v161 = vmax.f32 %v158, 0.0
    %v162 = vld [vmem:[#allocation2] sm:$0xff]
    %v163 = vld [vmem:[#allocation2 + $0x8] sm:$0xff]
    %v164 = vld [vmem:[#allocation2 + $0x10] sm:$0xff]
    %v165 = vld [vmem:[#allocation2 + $0x18] sm:$0xff]
    %v166 = vld [vmem:[#allocation2 + $0x20] sm:$0xff]
    %v167 = vld [vmem:[#allocation2 + $0x28] sm:$0xff]
    %v168 = vld [vmem:[#allocation2 + $0x30] sm:$0xff]
    %v169 = vld [vmem:[#allocation2 + $0x38] sm:$0xff]
    %v170 = vld [vmem:[#allocation2 + $0x40] sm:$0xff]
    %v171 = vld [vmem:[#allocation2 + $0x48] sm:$0xff]
    %v172 = vld [vmem:[#allocation2 + $0x50] sm:$0xff]
    %v173 = vld [vmem:[#allocation2 + $0x58] sm:$0xff]
    %v174 = vld [vmem:[#allocation2 + $0x60] sm:$0xff]
    %v175 = vld [vmem:[#allocation2 + $0x68] sm:$0xff]
    %v176 = vld [vmem:[#allocation2 + $0x70] sm:$0xff]
    %v177 = vld [vmem:[#allocation2 + $0x78] sm:$0xff]
    %v178 = vld [vmem:[#allocation2 + $0x80] sm:$0xff]
    %v179 = vld [vmem:[#allocation2 + $0x88] sm:$0xff]
    %v180 = vld [vmem:[#allocation2 + $0x90] sm:$0xff]
    %v181 = vld [vmem:[#allocation2 + $0x98] sm:$0xff]
    %v182 = vld [vmem:[#allocation2 + $0xa0] sm:$0xff]
    %v183 = vld [vmem:[#allocation2 + $0xa8] sm:$0xff]
    %v184 = vld [vmem:[#allocation2 + $0xb0] sm:$0xff]
    %v185 = vld [vmem:[#allocation2 + $0xb8] sm:$0xff]
    %v186 = vld [vmem:[#allocation2 + $0xc0] sm:$0xff]
    %v187 = vld [vmem:[#allocation2 + $0xc8] sm:$0xff]
    %v188 = vld [vmem:[#allocation2 + $0xd0] sm:$0xff]
    %v189 = vld [vmem:[#allocation2 + $0xd8] sm:$0xff]
    %v190 = vld [vmem:[#allocation2 + $0xe0] sm:$0xff]
    %v191 = vld [vmem:[#allocation2 + $0xe8] sm:$0xff]
    %v192 = vld [vmem:[#allocation2 + $0xf0] sm:$0xff]
    %v193 = vld [vmem:[#allocation2 + $0xf8] sm:$0xff]
    %v194 = vld [vmem:[#allocation2 + $0x100] sm:$0xff]
    %v195 = vld [vmem:[#allocation2 + $0x108] sm:$0xff]
    %v196 = vld [vmem:[#allocation2 + $0x110] sm:$0xff]
    %v197 = vld [vmem:[#allocation2 + $0x118] sm:$0xff]
    %v198 = vld [vmem:[#allocation2 + $0x120] sm:$0xff]
    %v199 = vld [vmem:[#allocation2 + $0x128] sm:$0xff]
    %v200 = vld [vmem:[#allocation2 + $0x130] sm:$0xff]
    %v201 = vld [vmem:[#allocation2 + $0x138] sm:$0xff]
    %v202 = vld [vmem:[#allocation2 + $0x140] sm:$0xff]
    %v203 = vld [vmem:[#allocation2 + $0x148] sm:$0xff]
    %v204 = vld [vmem:[#allocation2 + $0x150] sm:$0xff]
    %v205 = vld [vmem:[#allocation2 + $0x158] sm:$0xff]
    %v206 = vld [vmem:[#allocation2 + $0x160] sm:$0xff]
    %v207 = vld [vmem:[#allocation2 + $0x168] sm:$0xff]
    %v208 = vld [vmem:[#allocation2 + $0x170] sm:$0xff]
    %v209 = vld [vmem:[#allocation2 + $0x178] sm:$0xff]
    %v210 = vld [vmem:[#allocation2 + $0x180] sm:$0xff]
    %v211 = vld [vmem:[#allocation2 + $0x188] sm:$0xff]
    %v212 = vld [vmem:[#allocation2 + $0x190] sm:$0xff]
    %v213 = vld [vmem:[#allocation2 + $0x198] sm:$0xff]
    %v214 = vld [vmem:[#allocation2 + $0x1a0] sm:$0xff]
    %v215 = vld [vmem:[#allocation2 + $0x1a8] sm:$0xff]
    %v216 = vld [vmem:[#allocation2 + $0x1b0] sm:$0xff]
    %v217 = vld [vmem:[#allocation2 + $0x1b8] sm:$0xff]
    %v218 = vld [vmem:[#allocation2 + $0x1c0] sm:$0xff]
    %v219 = vld [vmem:[#allocation2 + $0x1c8] sm:$0xff]
    %v220 = vld [vmem:[#allocation2 + $0x1d0] sm:$0xff]
    %v221 = vld [vmem:[#allocation2 + $0x1d8] sm:$0xff]
    %v222 = vld [vmem:[#allocation2 + $0x1e0] sm:$0xff]
    %v223 = vld [vmem:[#allocation2 + $0x1e8] sm:$0xff]
    %v224 = vld [vmem:[#allocation2 + $0x1f0] sm:$0xff]
    %v225 = vld [vmem:[#allocation2 + $0x1f8] sm:$0xff]
    %v226 = vld [vmem:[%s4] sm:$0x3]
    %v228 = vlaneseq
    %v229 = vshrl.u32 %v228, 7
    %v230 = vsub.s32 0, %v229
    %v231 = vrot.slane %v226, %v230
    %v232 = vlaneseq
    %v233 = vshrl.u32 %v232, 7
    %v234 = vsub.s32 1, %v233
    %v235 = vrot.slane %v226, %v234
    %238 = vmatprep.subr.mxu0 %v193
    %239 = vmatpush1.msra.mxu0 %v192
    %240 = vmatprep.subr.mxu0 %v191
    %241 = vmatpush1.msra.mxu0 %v190
    %242 = vmatprep.subr.mxu0 %v189
    %243 = vmatpush1.msra.mxu0 %v188
    %244 = vmatprep.subr.mxu0 %v187
    %245 = vmatpush1.msra.mxu0 %v186
    %246 = vmatprep.subr.mxu0 %v185
    %247 = vmatpush1.msra.mxu0 %v184
    %248 = vmatprep.subr.mxu0 %v183
    %249 = vmatpush1.msra.mxu0 %v182
    %250 = vmatprep.subr.mxu0 %v181
    %251 = vmatpush1.msra.mxu0 %v180
    %252 = vmatprep.subr.mxu0 %v179
    %253 = vmatpush1.msra.mxu0 %v178
    %254 = vmatprep.subr.mxu0 %v177
    %255 = vmatpush1.msra.mxu0 %v176
    %256 = vmatprep.subr.mxu0 %v175
    %257 = vmatpush1.msra.mxu0 %v174
    %258 = vmatprep.subr.mxu0 %v173
    %259 = vmatpush1.msra.mxu0 %v172
    %260 = vmatprep.subr.mxu0 %v171
    %261 = vmatpush1.msra.mxu0 %v170
    %262 = vmatprep.subr.mxu0 %v169
    %263 = vmatpush1.msra.mxu0 %v168
    %264 = vmatprep.subr.mxu0 %v167
    %265 = vmatpush1.msra.mxu0 %v166
    %266 = vmatprep.subr.mxu0 %v165
    %267 = vmatpush1.msra.mxu0 %v164
    %268 = vmatprep.subr.mxu0 %v163
    %269 = vmatpush1.msra.mxu0 %v162
    %270 = vmatprep.subr.mxu0 %v225
    %271 = vmatpush2.msra.mxu0 %v224
    %272 = vmatprep.subr.mxu0 %v223
    %273 = vmatpush2.msra.mxu0 %v222
    %274 = vmatprep.subr.mxu0 %v221
    %275 = vmatpush2.msra.mxu0 %v220
    %276 = vmatprep.subr.mxu0 %v219
    %277 = vmatpush2.msra.mxu0 %v218
    %278 = vmatprep.subr.mxu0 %v217
    %279 = vmatpush2.msra.mxu0 %v216
    %280 = vmatprep.subr.mxu0 %v215
    %281 = vmatpush2.msra.mxu0 %v214
    %282 = vmatprep.subr.mxu0 %v213
    %283 = vmatpush2.msra.mxu0 %v212
    %284 = vmatprep.subr.mxu0 %v211
    %285 = vmatpush2.msra.mxu0 %v210
    %286 = vmatprep.subr.mxu0 %v209
    %287 = vmatpush2.msra.mxu0 %v208
    %288 = vmatprep.subr.mxu0 %v207
    %289 = vmatpush2.msra.mxu0 %v206
    %290 = vmatprep.subr.mxu0 %v205
    %291 = vmatpush2.msra.mxu0 %v204
    %292 = vmatprep.subr.mxu0 %v203
    %293 = vmatpush2.msra.mxu0 %v202
    %294 = vmatprep.subr.mxu0 %v201
    %295 = vmatpush2.msra.mxu0 %v200
    %296 = vmatprep.subr.mxu0 %v199
    %297 = vmatpush2.msra.mxu0 %v198
    %298 = vmatprep.subr.mxu0 %v197
    %299 = vmatpush2.msra.mxu0 %v196
    %300 = vmatprep.subr.mxu0 %v195
    %301 = vmatpush2.msra.mxu0 %v194
    %302 = vmatprep.mubr.f32.mxu0 %v161
    %303 = vmatmul.mubr.f32.gmra.mxu0 %v160
    %v304 = vpop.f32.mrf.mxu0
    %v305 = vadd.f32 %v231, %v304
    %v306 = vpop.f32.mrf.mxu0
    %v307 = vadd.f32 %v235, %v306
    %308 = vdwg.mxu0
    %v309 = vmax.f32 %v305, 0.0
    %v310 = vmax.f32 %v307, 0.0
    %v311 = vld [vmem:[%s5] sm:$0xff]
    %v312 = vld [vmem:[%s5 + $0x8] sm:$0xff]
    %v313 = vld [vmem:[%s5 + $0x10] sm:$0xff]
    %v314 = vld [vmem:[%s5 + $0x18] sm:$0xff]
    %v315 = vld [vmem:[%s5 + $0x20] sm:$0xff]
    %v316 = vld [vmem:[%s5 + $0x28] sm:$0xff]
    %v317 = vld [vmem:[%s5 + $0x30] sm:$0xff]
    %v318 = vld [vmem:[%s5 + $0x38] sm:$0xff]
    %v319 = vld [vmem:[%s5 + $0x40] sm:$0xff]
    %v320 = vld [vmem:[%s5 + $0x48] sm:$0xff]
    %v321 = vld [vmem:[%s5 + $0x50] sm:$0xff]
    %v322 = vld [vmem:[%s5 + $0x58] sm:$0xff]
    %v323 = vld [vmem:[%s5 + $0x60] sm:$0xff]
    %v324 = vld [vmem:[%s5 + $0x68] sm:$0xff]
    %v325 = vld [vmem:[%s5 + $0x70] sm:$0xff]
    %v326 = vld [vmem:[%s5 + $0x78] sm:$0xff]
    %v327 = vld [vmem:[%s5 + $0x80] sm:$0xff]
    %v328 = vld [vmem:[%s5 + $0x88] sm:$0xff]
    %v329 = vld [vmem:[%s5 + $0x90] sm:$0xff]
    %v330 = vld [vmem:[%s5 + $0x98] sm:$0xff]
    %v331 = vld [vmem:[%s5 + $0xa0] sm:$0xff]
    %v332 = vld [vmem:[%s5 + $0xa8] sm:$0xff]
    %v333 = vld [vmem:[%s5 + $0xb0] sm:$0xff]
    %v334 = vld [vmem:[%s5 + $0xb8] sm:$0xff]
    %v335 = vld [vmem:[%s5 + $0xc0] sm:$0xff]
    %v336 = vld [vmem:[%s5 + $0xc8] sm:$0xff]
    %v337 = vld [vmem:[%s5 + $0xd0] sm:$0xff]
    %v338 = vld [vmem:[%s5 + $0xd8] sm:$0xff]
    %v339 = vld [vmem:[%s5 + $0xe0] sm:$0xff]
    %v340 = vld [vmem:[%s5 + $0xe8] sm:$0xff]
    %v341 = vld [vmem:[%s5 + $0xf0] sm:$0xff]
    %v342 = vld [vmem:[%s5 + $0xf8] sm:$0xff]
    %v343 = vld [vmem:[%s6] sm:$0x1]
    %344 = vmatprep.subr.mxu0 0.0
    %345 = vmatpush1.msra.mxu0 %v326
    %346 = vmatprep.subr.mxu0 0.0
    %347 = vmatpush1.msra.mxu0 %v325
    %348 = vmatprep.subr.mxu0 0.0
    %349 = vmatpush1.msra.mxu0 %v324
    %350 = vmatprep.subr.mxu0 0.0
    %351 = vmatpush1.msra.mxu0 %v323
    %352 = vmatprep.subr.mxu0 0.0
    %353 = vmatpush1.msra.mxu0 %v322
    %354 = vmatprep.subr.mxu0 0.0
    %355 = vmatpush1.msra.mxu0 %v321
    %356 = vmatprep.subr.mxu0 0.0
    %357 = vmatpush1.msra.mxu0 %v320
    %358 = vmatprep.subr.mxu0 0.0
    %359 = vmatpush1.msra.mxu0 %v319
    %360 = vmatprep.subr.mxu0 0.0
    %361 = vmatpush1.msra.mxu0 %v318
    %362 = vmatprep.subr.mxu0 0.0
    %363 = vmatpush1.msra.mxu0 %v317
    %364 = vmatprep.subr.mxu0 0.0
    %365 = vmatpush1.msra.mxu0 %v316
    %366 = vmatprep.subr.mxu0 0.0
    %367 = vmatpush1.msra.mxu0 %v315
    %368 = vmatprep.subr.mxu0 0.0
    %369 = vmatpush1.msra.mxu0 %v314
    %370 = vmatprep.subr.mxu0 0.0
    %371 = vmatpush1.msra.mxu0 %v313
    %372 = vmatprep.subr.mxu0 0.0
    %373 = vmatpush1.msra.mxu0 %v312
    %374 = vmatprep.subr.mxu0 0.0
    %375 = vmatpush1.msra.mxu0 %v311
    %376 = vmatprep.subr.mxu0 0.0
    %377 = vmatpush2.msra.mxu0 %v342
    %378 = vmatprep.subr.mxu0 0.0
    %379 = vmatpush2.msra.mxu0 %v341
    %380 = vmatprep.subr.mxu0 0.0
    %381 = vmatpush2.msra.mxu0 %v340
    %382 = vmatprep.subr.mxu0 0.0
    %383 = vmatpush2.msra.mxu0 %v339
    %384 = vmatprep.subr.mxu0 0.0
    %385 = vmatpush2.msra.mxu0 %v338
    %386 = vmatprep.subr.mxu0 0.0
    %387 = vmatpush2.msra.mxu0 %v337
    %388 = vmatprep.subr.mxu0 0.0
    %389 = vmatpush2.msra.mxu0 %v336
    %390 = vmatprep.subr.mxu0 0.0
    %391 = vmatpush2.msra.mxu0 %v335
    %392 = vmatprep.subr.mxu0 0.0
    %393 = vmatpush2.msra.mxu0 %v334
    %394 = vmatprep.subr.mxu0 0.0
    %395 = vmatpush2.msra.mxu0 %v333
    %396 = vmatprep.subr.mxu0 0.0
    %397 = vmatpush2.msra.mxu0 %v332
    %398 = vmatprep.subr.mxu0 0.0
    %399 = vmatpush2.msra.mxu0 %v331
    %400 = vmatprep.subr.mxu0 0.0
    %401 = vmatpush2.msra.mxu0 %v330
    %402 = vmatprep.subr.mxu0 0.0
    %403 = vmatpush2.msra.mxu0 %v329
    %404 = vmatprep.subr.mxu0 0.0
    %405 = vmatpush2.msra.mxu0 %v328
    %406 = vmatprep.subr.mxu0 0.0
    %407 = vmatpush2.msra.mxu0 %v327
    %408 = vmatprep.mubr.f32.mxu0 %v310
    %409 = vmatmul.mubr.f32.gmra.mxu0 %v309
    %v410 = vpop.f32.mrf.mxu0
    %v411 = vadd.f32 %v343, %v410
    %v412 = vpop.f32.mrf.mxu0
    %413 = vdwg.mxu0
    %vm414 = vcmask 516096
    %v415 = vsel %vm414, %v411, -inf
    %416 = vmax.xlane.f32.xlu0 %v415
    %v417 = vpop.xlane.xlu0 %416
    %v418 = vsub.f32 %v411, %v417
    %v419 = vmax.f32 %v418, -80.0
    %v420 = vmul.f32 %v419, 1.442695
    %v421 = vpow.pop %v420
    %v422 = vld [vmem:[%s7] sm:$0xff]
    %v423 = vld [vmem:[%s7 + $0x8] sm:$0xff]
    %v424 = vld [vmem:[%s7 + $0x10] sm:$0xff]
    %v425 = vld [vmem:[%s7 + $0x18] sm:$0xff]
    %v426 = vld [vmem:[%s7 + $0x20] sm:$0xff]
    %v427 = vld [vmem:[%s7 + $0x28] sm:$0xff]
    %v428 = vld [vmem:[%s7 + $0x30] sm:$0xff]
    %v429 = vld [vmem:[%s7 + $0x38] sm:$0xff]
    %vm430 = vcmask 523264
    %v432 = vsel %vm430, %v421, 0
    %434 = vmatprep.subr.mxu0 0.0
    %435 = vmatpush1.msra.mxu0 0.0
    %436 = vmatprep.subr.mxu0 0.0
    %437 = vmatpush1.msra.mxu0 0.0
    %438 = vmatprep.subr.mxu0 0.0
    %439 = vmatpush1.msra.mxu0 0.0
    %440 = vmatprep.subr.mxu0 0.0
    %441 = vmatpush1.msra.mxu0 0.0
    %442 = vmatprep.subr.mxu0 0.0
    %443 = vmatpush1.msra.mxu0 0.0
    %444 = vmatprep.subr.mxu0 0.0
    %445 = vmatpush1.msra.mxu0 0.0
    %446 = vmatprep.subr.mxu0 0.0
    %447 = vmatpush1.msra.mxu0 0.0
    %448 = vmatprep.subr.mxu0 0.0
    %449 = vmatpush1.msra.mxu0 0.0
    %450 = vmatprep.subr.mxu0 0.0
    %451 = vmatpush1.msra.mxu0 %v429
    %452 = vmatprep.subr.mxu0 0.0
    %453 = vmatpush1.msra.mxu0 %v428
    %454 = vmatprep.subr.mxu0 0.0
    %455 = vmatpush1.msra.mxu0 %v427
    %456 = vmatprep.subr.mxu0 0.0
    %457 = vmatpush1.msra.mxu0 %v426
    %458 = vmatprep.subr.mxu0 0.0
    %459 = vmatpush1.msra.mxu0 %v425
    %460 = vmatprep.subr.mxu0 0.0
    %461 = vmatpush1.msra.mxu0 %v424
    %462 = vmatprep.subr.mxu0 0.0
    %463 = vmatpush1.msra.mxu0 %v423
    %464 = vmatprep.subr.mxu0 0.0
    %465 = vmatpush1.msra.mxu0 %v422
    %466 = vmatprep.subr.mxu0 0.0
    %467 = vmatpush2.msra.mxu0 0.0
    %468 = vmatprep.subr.mxu0 0.0
    %469 = vmatpush2.msra.mxu0 0.0
    %470 = vmatprep.subr.mxu0 0.0
    %471 = vmatpush2.msra.mxu0 0.0
    %472 = vmatprep.subr.mxu0 0.0
    %473 = vmatpush2.msra.mxu0 0.0
    %474 = vmatprep.subr.mxu0 0.0
    %475 = vmatpush2.msra.mxu0 0.0
    %476 = vmatprep.subr.mxu0 0.0
    %477 = vmatpush2.msra.mxu0 0.0
    %478 = vmatprep.subr.mxu0 0.0
    %479 = vmatpush2.msra.mxu0 0.0
    %480 = vmatprep.subr.mxu0 0.0
    %481 = vmatpush2.msra.mxu0 0.0
    %482 = vmatprep.subr.mxu0 0.0
    %483 = vmatpush2.msra.mxu0 0.0
    %484 = vmatprep.subr.mxu0 0.0
    %485 = vmatpush2.msra.mxu0 0.0
    %486 = vmatprep.subr.mxu0 0.0
    %487 = vmatpush2.msra.mxu0 0.0
    %488 = vmatprep.subr.mxu0 0.0
    %489 = vmatpush2.msra.mxu0 0.0
    %490 = vmatprep.subr.mxu0 0.0
    %491 = vmatpush2.msra.mxu0 0.0
    %492 = vmatprep.subr.mxu0 0.0
    %493 = vmatpush2.msra.mxu0 0.0
    %494 = vmatprep.subr.mxu0 0.0
    %495 = vmatpush2.msra.mxu0 0.0
    %496 = vmatprep.subr.mxu0 0.0
    %497 = vmatpush2.msra.mxu0 0.0
    %498 = vmatprep.mubr.f32.mxu0 0.0
    %499 = vmatmul.mubr.f32.gmra.mxu0 %v432
    %v500 = vpop.f32.mrf.mxu0
    %v501 = vadd.f32 0.0, %v500
    %v502 = vpop.f32.mrf.mxu0
    %503 = vdwg.mxu0
    %v504 = vrcp.pop %v501
    %v505 = vmul.f32 %v421, %v504
    %506 = vst.msk [vmem:[#allocation5] sm:$0x1] %vm414, %v505
    // Predicated region
    $region38: #{tpu_custom_call.1} parent=1 // pred_check
      _
    $region39: #{tpu_custom_call.1} parent=1 // pred_check_branch
      %508 = sbr.rel (0) target = $region41
    $region40: #{tpu_custom_call.1} parent=1 // pred_region
      %s510 = ssub.s32 16, 16
      %511 = vsyncadd [#allocation4], %s510
      %s513 = sshll.u32 [#allocation5], 4
      %s514 = int_to_ptr.vmem [resolvable:$true] %s513
      %516 = dma.vmem_to_hbm [thread:$0]  %s514, 16, %s8, [#allocation4]
    $region41: #{tpu_custom_call.1} parent=1 // pred_fallthru
      _
    // Predicated region
    $region42: #{tpu_custom_call.1} parent=1 // pred_check
      _
    $region43: #{tpu_custom_call.1} parent=1 // pred_check_branch
      %518 = sbr.rel (0) target = $region45
    $region44: #{tpu_custom_call.1} parent=1 // pred_region
      %519 = dma.done [#allocation4], 16
    $region45: #{tpu_custom_call.1} parent=1 // pred_fallthru
      _
    %520 = vsyncpa [#allocation3], 1
    %521 = vsyncpa [#allocation4], 1

</llo_original>
